<compile_context>
chip_gen: v5e
topology: v5e:2x2
jax: 0.10.0
libtpu: 0.0.40
codegen_flags: <defaults>
</compile_context>

<pallas_src>
import jax
import jax.numpy as jnp
import numpy as np
from jax.experimental import pallas as pl
from jax.experimental.pallas import tpu as pltpu


def _round_up(n, m):
    return ((n + m - 1) // m) * m


# Rough per-row VMEM footprint (bytes) at f32: double-buffered x / cls / crowd
# tiles (each lane-padded to 128) + h/logits/e/cls temporaries.
_VMEM_BYTES_PER_ROW = 10 * 128 * 4
# Keep the per-step footprint under ~48 MiB so double-buffering survives on
# v7x's 64 MiB physical VMEM (v5e/v6e have 128 MiB physical).
_MAX_BLOCK_B = ((48 << 20) // _VMEM_BYTES_PER_ROW) // 8 * 8


def _generator_kernel(x_ref, w1_ref, b1_ref, w2_ref, b2_ref, k_ref,
                      cls_ref, crowd_ref):
    # --- classifier MLP: Linear -> ReLU -> (Dropout=id) -> Linear ---
    x = x_ref[...].astype(w1_ref.dtype)                               # (bm, D)
    h = jnp.dot(x, w1_ref[...], preferred_element_type=jnp.float32)   # (bm, H)
    h = jnp.maximum(h + b1_ref[...], 0.0)

    logits = jnp.dot(h.astype(w2_ref.dtype), w2_ref[...],
                     preferred_element_type=jnp.float32) + b2_ref[...]  # (bm, C)

    # --- softmax(dim=1); exact divide (kernel is DMA-bound, divide is free) ---
    m = jnp.max(logits, axis=-1, keepdims=True)
    e = jnp.exp(logits - m)
    cls = e / jnp.sum(e, axis=-1, keepdims=True)
    cls_ref[...] = cls.astype(cls_ref.dtype)

    # --- crowd[i,k,l] = sum_j cls[i,j] * kernel[j,k,l]  ==  cls @ kflat ---
    crowd_ref[...] = jnp.dot(
        cls, k_ref[...], preferred_element_type=jnp.float32
    ).astype(crowd_ref.dtype)


def generator_forward(x, w1, b1, w2, b2, crowd_kernel, *, block_b=2048):
    """Returns (cls_out (B, C) f32, crowd_out (B, C, A) f32)."""
    B = x.shape[0]
    x2d = x.reshape(B, -1)                        # x.view(B, -1)
    D = x2d.shape[1]
    H = w1.shape[1]
    C, _, A = crowd_kernel.shape

    # x is fed in its own dtype (f32 or bf16) — no wrapper-side cast pass over
    # HBM.  Only the tiny resident weights follow the activation dtype.
    mm_dtype = x2d.dtype
    w1_c = w1.astype(mm_dtype)
    w2_c = w2.astype(mm_dtype)
    b1r = b1.reshape(1, H).astype(jnp.float32)
    b2r = b2.reshape(1, C).astype(jnp.float32)
    kflat = crowd_kernel.reshape(C, C * A).astype(jnp.float32)

    # Batch tile: large enough to amortize the ~0.35 us per-grid-step overhead,
    # clamped to the batch, the VMEM budget, and (for big B) >=2 grid steps so
    # v7x megacore shards the batch across both TensorCores.
    block_b = max(8, min(block_b, _round_up(B, 8), _MAX_BLOCK_B))
    if B >= 4096:
        block_b = min(block_b, _round_up(-(-B // 2), 8))
    grid = (pl.cdiv(B, block_b),)

    vmem_need = block_b * _VMEM_BYTES_PER_ROW + (2 << 20)
    # Raise the scoped-VMEM limit only when the default (16 MiB on v5e,
    # 32 MiB on v6e/v7x) would be too small; cap below v7x's 64 MiB physical.
    vmem_limit = None if vmem_need <= (12 << 20) else min(vmem_need, 56 << 20)

    itemsize = jnp.dtype(mm_dtype).itemsize
    cost = pl.CostEstimate(
        flops=2 * B * (D * H + H * C + C * C * A),
        transcendentals=B * C,
        bytes_accessed=(B * (D * itemsize + (C + C * A) * 4)
                        + (D * H + H * C) * itemsize
                        + (H + C + C * C * A) * 4),
    )

    cls_out, crowd_flat = pl.pallas_call(
        _generator_kernel,
        out_shape=(jax.ShapeDtypeStruct((B, C), jnp.float32),
                   jax.ShapeDtypeStruct((B, C * A), jnp.float32)),
        grid_spec=pltpu.PrefetchScalarGridSpec(
            num_scalar_prefetch=0,
            grid=grid,
            in_specs=[
                pl.BlockSpec((block_b, D), lambda i: (i, 0)),   # x tile
                pl.BlockSpec((D, H), lambda i: (0, 0)),         # W1 (resident)
                pl.BlockSpec((1, H), lambda i: (0, 0)),         # b1
                pl.BlockSpec((H, C), lambda i: (0, 0)),         # W2
                pl.BlockSpec((1, C), lambda i: (0, 0)),         # b2
                pl.BlockSpec((C, C * A), lambda i: (0, 0)),     # kernel (C, C*A)
            ],
            out_specs=[
                pl.BlockSpec((block_b, C), lambda i: (i, 0)),       # cls
                pl.BlockSpec((block_b, C * A), lambda i: (i, 0)),   # crowd
            ],
        ),
        compiler_params=pltpu.CompilerParams(
            dimension_semantics=("parallel",),   # megacore batch sharding
            vmem_limit_bytes=vmem_limit),
        cost_estimate=cost,
    )(x2d, w1_c, b1r, w2_c, b2r, kflat)

    # (B, C*A) -> (B, C, A): layout-trivial reshape, no extra HBM pass.
    return cls_out, crowd_flat.reshape(B, C, A)


def init_identities(num_class, num_annotators):
    # Mirrors init_identities(): out[i, i, r] = 2.0
    out = np.zeros((num_class, num_class, num_annotators), dtype=np.float32)
    for r in range(num_annotators):
        for i in range(num_class):
            out[i, i, r] = 2.0
    return jnp.asarray(out)


def reference_forward(x, w1, b1, w2, b2, crowd_kernel):
    x2d = x.reshape(x.shape[0], -1)
    hp = jax.lax.Precision.HIGHEST
    h = jnp.maximum(jnp.dot(x2d, w1, precision=hp) + b1, 0.0)
    logits = jnp.dot(h, w2, precision=hp) + b2
    cls = jax.nn.softmax(logits, axis=1)
    crowd = jnp.einsum('ij,jkl->ikl', cls, crowd_kernel, precision=hp)
    return cls, crowd


if __name__ == "__main__":
    # Small shapes consistent with the module:
    #   batch=16, input_dims=64, num_class=8, num_annotators=4, emb_dim=128
    B, D, C, A, H = 16, 64, 8, 4, 128

    key = jax.random.PRNGKey(0)
    kx, k1, kb1, k2, kb2 = jax.random.split(key, 5)

    x = jax.random.normal(kx, (B, D), dtype=jnp.float32)

    # Deterministic parameter init (uniform, PyTorch-Linear-like bounds).
    lim1 = 1.0 / np.sqrt(D)
    w1 = jax.random.uniform(k1, (D, H), minval=-lim1, maxval=lim1, dtype=jnp.float32)
    b1 = jax.random.uniform(kb1, (H,), minval=-lim1, maxval=lim1, dtype=jnp.float32)
    lim2 = 1.0 / np.sqrt(H)
    w2 = jax.random.uniform(k2, (H, C), minval=-lim2, maxval=lim2, dtype=jnp.float32)
    b2 = jax.random.uniform(kb2, (C,), minval=-lim2, maxval=lim2, dtype=jnp.float32)

    crowd_kernel = init_identities(C, A)

    cls_ref, crowd_ref = reference_forward(x, w1, b1, w2, b2, crowd_kernel)

    # f32 path with a small tile (grid of 2 steps exercises tiling / megacore
    # sharding).  Exact softmax -> tight tolerance.
    cls_out, crowd_out = generator_forward(
        x, w1, b1, w2, b2, crowd_kernel, block_b=8)
    jax.block_until_ready((cls_out, crowd_out))
    assert cls_out.shape == (B, C) and crowd_out.shape == (B, C, A)
    np.testing.assert_allclose(np.asarray(cls_out), np.asarray(cls_ref),
                               rtol=1e-3, atol=1e-5)
    np.testing.assert_allclose(np.asarray(crowd_out), np.asarray(crowd_ref),
                               rtol=1e-3, atol=1e-5)

    # Default (large-tile) path: block_b clamps to the batch -> single step.
    cls_d, crowd_d = generator_forward(x, w1, b1, w2, b2, crowd_kernel)
    jax.block_until_ready((cls_d, crowd_d))
    np.testing.assert_allclose(np.asarray(cls_d), np.asarray(cls_ref),
                               rtol=1e-3, atol=1e-5)
    np.testing.assert_allclose(np.asarray(crowd_d), np.asarray(crowd_ref),
                               rtol=1e-3, atol=1e-5)

    # bf16-activation path: caller hands in bf16 x (half the x DMA); weights
    # follow the input dtype, f32 accumulation retained.  Tolerance derived
    # from bf16 rounding (~2^-8 relative on the matmul inputs).
    cls_bf, crowd_bf = generator_forward(
        x.astype(jnp.bfloat16), w1, b1, w2, b2, crowd_kernel, block_b=8)
    jax.block_until_ready((cls_bf, crowd_bf))
    np.testing.assert_allclose(np.asarray(cls_bf), np.asarray(cls_ref),
                               rtol=5e-2, atol=5e-3)
    np.testing.assert_allclose(np.asarray(crowd_bf), np.asarray(crowd_ref),
                               rtol=5e-2, atol=5e-3)

    # TODO(synk): `generate()` path (user/item embeddings + gen_flow) is not part
    # of forward() and is omitted; Dropout/BatchNorm are inference-mode identities.
    print("KERNEL_OK")
</pallas_src>

<mosaic_0001>
module attributes {stable_mosaic.version = 11 : i64} {
  func.func @_generator_kernel(%arg0: i32, %arg1: memref<8x64xf32, #tpu.memory_space<vmem>>, %arg2: memref<64x128xf32, #tpu.memory_space<vmem>>, %arg3: memref<1x128xf32, #tpu.memory_space<vmem>>, %arg4: memref<128x8xf32, #tpu.memory_space<vmem>>, %arg5: memref<1x8xf32, #tpu.memory_space<vmem>>, %arg6: memref<8x32xf32, #tpu.memory_space<vmem>>, %arg7: memref<8x8xf32, #tpu.memory_space<vmem>>, %arg8: memref<8x32xf32, #tpu.memory_space<vmem>>) attributes {dimension_semantics = [#tpu.dimension_semantics<parallel>], iteration_bounds = array<i64: 2>, scalar_prefetch = 0 : i64, scratch_operands = 0 : i64, tpu.core_type = #tpu.core_type<tc>, window_params = [{transform_indices = @transform_0, window_bounds = array<i64: 8, 64>}, {pipeline_mode = #tpu.pipeline_mode<synchronous>, transform_indices = @transform_1, window_bounds = array<i64: 64, 128>}, {pipeline_mode = #tpu.pipeline_mode<synchronous>, transform_indices = @transform_2, window_bounds = array<i64: 1, 128>}, {pipeline_mode = #tpu.pipeline_mode<synchronous>, transform_indices = @transform_3, window_bounds = array<i64: 128, 8>}, {pipeline_mode = #tpu.pipeline_mode<synchronous>, transform_indices = @transform_4, window_bounds = array<i64: 1, 8>}, {pipeline_mode = #tpu.pipeline_mode<synchronous>, transform_indices = @transform_5, window_bounds = array<i64: 8, 32>}, {transform_indices = @transform_6, window_bounds = array<i64: 8, 8>}, {transform_indices = @transform_7, window_bounds = array<i64: 8, 32>}]} {
    %c0 = arith.constant 0 : index
    %c0_0 = arith.constant 0 : index
    %0 = vector.load %arg1[%c0, %c0_0] : memref<8x64xf32, #tpu.memory_space<vmem>>, vector<8x64xf32>
    %c0_1 = arith.constant 0 : index
    %c0_2 = arith.constant 0 : index
    %1 = vector.load %arg2[%c0_1, %c0_2] : memref<64x128xf32, #tpu.memory_space<vmem>>, vector<64x128xf32>
    %cst = arith.constant dense<0.000000e+00> : vector<8x128xf32>
    %2 = tpu.matmul %0, %1, %cst {dimension_numbers = #tpu.dot_dimension_numbers<[1], [0], [0], [1], [0, 0, 1, 1], [], []>} : vector<8x64xf32>, vector<64x128xf32>, vector<8x128xf32> -> vector<8x128xf32>
    %c0_3 = arith.constant 0 : index
    %c0_4 = arith.constant 0 : index
    %3 = vector.load %arg3[%c0_3, %c0_4] : memref<1x128xf32, #tpu.memory_space<vmem>>, vector<1x128xf32>
    %4 = vector.broadcast %3 : vector<1x128xf32> to vector<8x128xf32>
    %5 = arith.addf %2, %4 : vector<8x128xf32>
    %cst_5 = arith.constant 0.000000e+00 : f32
    %6 = vector.broadcast %cst_5 : f32 to vector<8x128xf32>
    %7 = arith.maximumf %5, %6 : vector<8x128xf32>
    %c0_6 = arith.constant 0 : index
    %c0_7 = arith.constant 0 : index
    %8 = vector.load %arg4[%c0_6, %c0_7] : memref<128x8xf32, #tpu.memory_space<vmem>>, vector<128x8xf32>
    %cst_8 = arith.constant dense<0.000000e+00> : vector<8x8xf32>
    %9 = tpu.matmul %7, %8, %cst_8 {dimension_numbers = #tpu.dot_dimension_numbers<[1], [0], [0], [1], [0, 0, 1, 1], [], []>} : vector<8x128xf32>, vector<128x8xf32>, vector<8x8xf32> -> vector<8x8xf32>
    %c0_9 = arith.constant 0 : index
    %c0_10 = arith.constant 0 : index
    %10 = vector.load %arg5[%c0_9, %c0_10] : memref<1x8xf32, #tpu.memory_space<vmem>>, vector<1x8xf32>
    %11 = vector.broadcast %10 : vector<1x8xf32> to vector<8x8xf32>
    %12 = arith.addf %9, %11 : vector<8x8xf32>
    %cst_11 = arith.constant dense<0xFF800000> : vector<8xf32>
    %13 = vector.multi_reduction <maximumf>, %12, %cst_11 [1] : vector<8x8xf32> to vector<8xf32>
    %14 = vector.shape_cast %13 : vector<8xf32> to vector<8x1xf32>
    %15 = vector.broadcast %14 : vector<8x1xf32> to vector<8x8xf32>
    %16 = arith.subf %12, %15 : vector<8x8xf32>
    %17 = math.exp %16 : vector<8x8xf32>
    %cst_12 = arith.constant dense<0.000000e+00> : vector<8xf32>
    %18 = vector.multi_reduction <add>, %17, %cst_12 [1] : vector<8x8xf32> to vector<8xf32>
    %19 = vector.shape_cast %18 : vector<8xf32> to vector<8x1xf32>
    %20 = vector.broadcast %19 : vector<8x1xf32> to vector<8x8xf32>
    %21 = arith.divf %17, %20 : vector<8x8xf32>
    %c0_13 = arith.constant 0 : index
    %c0_14 = arith.constant 0 : index
    %22 = vector.load %arg7[%c0_13, %c0_14] : memref<8x8xf32, #tpu.memory_space<vmem>>, vector<8x8xf32>
    tpu.vector_store %arg7[%c0_13, %c0_14], %21 {strides = array<i32>} : memref<8x8xf32, #tpu.memory_space<vmem>>, vector<8x8xf32>,
    %c0_15 = arith.constant 0 : index
    %c0_16 = arith.constant 0 : index
    %23 = vector.load %arg6[%c0_15, %c0_16] : memref<8x32xf32, #tpu.memory_space<vmem>>, vector<8x32xf32>
    %cst_17 = arith.constant dense<0.000000e+00> : vector<8x32xf32>
    %24 = tpu.matmul %21, %23, %cst_17 {dimension_numbers = #tpu.dot_dimension_numbers<[1], [0], [0], [1], [0, 0, 1, 1], [], []>} : vector<8x8xf32>, vector<8x32xf32>, vector<8x32xf32> -> vector<8x32xf32>
    %c0_18 = arith.constant 0 : index
    %c0_19 = arith.constant 0 : index
    %25 = vector.load %arg8[%c0_18, %c0_19] : memref<8x32xf32, #tpu.memory_space<vmem>>, vector<8x32xf32>
    tpu.vector_store %arg8[%c0_18, %c0_19], %24 {strides = array<i32>} : memref<8x32xf32, #tpu.memory_space<vmem>>, vector<8x32xf32>,
    return
  }
  func.func @transform_0(%arg0: i32) -> (i32, i32) {
    %c0_i32 = arith.constant 0 : i32
    %c0_i32_0 = arith.constant 0 : i32
    return %arg0, %c0_i32 : i32, i32
  }
  func.func @transform_1(%arg0: i32) -> (i32, i32) {
    %c0_i32 = arith.constant 0 : i32
    %c0_i32_0 = arith.constant 0 : i32
    %c0_i32_1 = arith.constant 0 : i32
    return %c0_i32, %c0_i32_0 : i32, i32
  }
  func.func @transform_2(%arg0: i32) -> (i32, i32) {
    %c0_i32 = arith.constant 0 : i32
    %c0_i32_0 = arith.constant 0 : i32
    %c0_i32_1 = arith.constant 0 : i32
    return %c0_i32, %c0_i32_0 : i32, i32
  }
  func.func @transform_3(%arg0: i32) -> (i32, i32) {
    %c0_i32 = arith.constant 0 : i32
    %c0_i32_0 = arith.constant 0 : i32
    %c0_i32_1 = arith.constant 0 : i32
    return %c0_i32, %c0_i32_0 : i32, i32
  }
  func.func @transform_4(%arg0: i32) -> (i32, i32) {
    %c0_i32 = arith.constant 0 : i32
    %c0_i32_0 = arith.constant 0 : i32
    %c0_i32_1 = arith.constant 0 : i32
    return %c0_i32, %c0_i32_0 : i32, i32
  }
  func.func @transform_5(%arg0: i32) -> (i32, i32) {
    %c0_i32 = arith.constant 0 : i32
    %c0_i32_0 = arith.constant 0 : i32
    %c0_i32_1 = arith.constant 0 : i32
    return %c0_i32, %c0_i32_0 : i32, i32
  }
  func.func @transform_6(%arg0: i32) -> (i32, i32) {
    %c0_i32 = arith.constant 0 : i32
    %c0_i32_0 = arith.constant 0 : i32
    return %arg0, %c0_i32 : i32, i32
  }
  func.func @transform_7(%arg0: i32) -> (i32, i32) {
    %c0_i32 = arith.constant 0 : i32
    %c0_i32_0 = arith.constant 0 : i32
    return %arg0, %c0_i32 : i32, i32
  }
}

</mosaic_0001>

<llo_original>
// kernel: tpu_custom_call.1
$region0: #{tpu_custom_call.1}
  #allocation0 [shape = 'u32[]', space=smem, size = 0x4, offset = 0x4, fixed_abs, tag = 'smem constant byte address 0x4 - core index']
  #allocation1 [shape = 'u32[72,128]{1,0:T(1,128)}', space=vmem, size = 0x9000, scoped, tag = 'internal scratch']
  %s0 = inlined_call_operand.vmem [shape: f32[16,64], index: 0, kind: input, shape index: {}]
  %s1 = inlined_call_operand.vmem [shape: f32[64,128], index: 1, kind: input, shape index: {}]
  %s2 = inlined_call_operand.vmem [shape: f32[1,128], index: 2, kind: input, shape index: {}]
  %s3 = inlined_call_operand.vmem [shape: f32[128,8], index: 3, kind: input, shape index: {}]
  %s4 = inlined_call_operand.vmem [shape: f32[1,8], index: 4, kind: input, shape index: {}]
  %s5 = inlined_call_operand.vmem [shape: f32[8,32], index: 5, kind: input, shape index: {}]
  %s6 = inlined_call_operand.vmem [shape: f32[16,8], index: 6, kind: output, shape index: {0}]
  %s7 = inlined_call_operand.hbm [shape: f32[16,32], index: 7, kind: output, shape index: {1}]
  %8 = xla_tuple %s6, %s7
  %s9 = sld [smem:[#allocation0]]
  $region65: #{tpu_custom_call.1} parent=0
    _
  %s11 = ssub.s32 1, %s9
  %s12 = scalar_select 0, %s11, %s9
  $region1: #{tpu_custom_call.1} parent=0
    #allocation2 [shape = 'u8[8192]{0}', space=vmem, size = 0x2000, scoped, tag = 'output window, operand 1']
    #allocation3 [shape = 's32[2]{0}', space=sflag, size = 0x8, scoped, tag = 'scoped memory for tpu_custom_call.1']
    %13 = vsyncpa [#allocation3], 0
    %s14 = scalar_lea.sflag [#allocation3], 1
    %15 = vsyncpa %s14, 0
    loop: start=0, step=1, limit=4
    $region2: #{tpu_custom_call.1} parent=1 // loop_pre_header
      _
    $region3: #{tpu_custom_call.1} parent=1 // loop_header
      %s17 = sphi 0, %s21
      %p18 = scmp.ge.s32.totalorder %s17, 4
      %s27 = sphi 0, %s29
      %s30 = sphi 0, %s27
      %s31 = sphi 0, %s30
      %s47 = sphi 0, %s31
      %s51 = sphi 0, %s51
      %s53 = sphi 0, %s51
      %s54 = sphi 0, %s53
      %s68 = sphi 0, %s54
      %s72 = sphi 0, %s72
      %s74 = sphi 0, %s72
      %s75 = sphi 0, %s74
      %s89 = sphi 0, %s75
      %s93 = sphi 0, %s93
      %s95 = sphi 0, %s93
      %s96 = sphi 0, %s95
      %s110 = sphi 0, %s96
      %s114 = sphi 0, %s114
      %s116 = sphi 0, %s114
      %s117 = sphi 0, %s116
      %s131 = sphi 0, %s117
      %s135 = sphi 0, %s135
      %s137 = sphi 0, %s135
      %s138 = sphi 0, %s137
      %s152 = sphi 0, %s138
      %s158 = sphi 0, %s160
      %s161 = sphi 0, %s158
      %s162 = sphi 0, %s161
      %s178 = sphi 0, %s162
      %s184 = sphi 0, %s186
      %s187 = sphi 0, %s184
      %s188 = sphi 0, %s187
      %s204 = sphi 0, %s188
    $region4: #{tpu_custom_call.1} parent=1 // loop_header_branch
      %20 = sbr.rel (%p18) target = $region8
    $region5: #{tpu_custom_call.1} parent=1 // loop_body
      %s22 = ssub.s32 %s17, 1
      %s23 = ssub.s32 %s17, 2
      %s24 = sadd.s32 %s17, 1
      %s25 = ssub.s32 %s17, %s24
      %p26 = scmp.eq.s32.totalorder %s25, 0
      %s28 = sadd.s32 %s27, 1
      %s29 = scalar_select %p26, %s27, %s28
      %p32 = pneg %p26
      %p33 = scmp.eq.s32.totalorder %s17, 1
      %p34 = por %p32, %p33
      %p35 = scmp.ne.s32.totalorder %s27, %s30
      %p36 = scmp.eq.s32.totalorder %s17, 0
      %p37 = por %p35, %p36
      %p38 = scmp.ne.s32.totalorder %s27, %s30
      %p39 = scmp.eq.s32.totalorder %s22, 1
      %p40 = por %p38, %p39
      %p41 = scmp.ne.s32.totalorder %s30, %s31
      %p42 = scmp.eq.s32.totalorder %s22, 0
      %p43 = por %p41, %p42
      %p44 = scmp.ne.s32.totalorder %s30, %s31
      %p45 = scmp.eq.s32.totalorder %s23, 1
      %p46 = por %p44, %p45
      %p48 = scmp.ne.s32.totalorder %s31, %s47
      %p49 = scmp.eq.s32.totalorder %s23, 0
      %p50 = por %p48, %p49
      %s52 = sadd.s32 %s51, 1
      %p55 = scmp.eq.s32.totalorder %s17, 1
      %p56 = scmp.ne.s32.totalorder %s51, %s53
      %p57 = scmp.eq.s32.totalorder %s17, 0
      %p58 = por %p56, %p57
      %p59 = scmp.ne.s32.totalorder %s51, %s53
      %p60 = scmp.eq.s32.totalorder %s22, 1
      %p61 = por %p59, %p60
      %p62 = scmp.ne.s32.totalorder %s53, %s54
      %p63 = scmp.eq.s32.totalorder %s22, 0
      %p64 = por %p62, %p63
      %p65 = scmp.ne.s32.totalorder %s53, %s54
      %p66 = scmp.eq.s32.totalorder %s23, 1
      %p67 = por %p65, %p66
      %p69 = scmp.ne.s32.totalorder %s54, %s68
      %p70 = scmp.eq.s32.totalorder %s23, 0
      %p71 = por %p69, %p70
      %s73 = sadd.s32 %s72, 1
      %p76 = scmp.eq.s32.totalorder %s17, 1
      %p77 = scmp.ne.s32.totalorder %s72, %s74
      %p78 = scmp.eq.s32.totalorder %s17, 0
      %p79 = por %p77, %p78
      %p80 = scmp.ne.s32.totalorder %s72, %s74
      %p81 = scmp.eq.s32.totalorder %s22, 1
      %p82 = por %p80, %p81
      %p83 = scmp.ne.s32.totalorder %s74, %s75
      %p84 = scmp.eq.s32.totalorder %s22, 0
      %p85 = por %p83, %p84
      %p86 = scmp.ne.s32.totalorder %s74, %s75
      %p87 = scmp.eq.s32.totalorder %s23, 1
      %p88 = por %p86, %p87
      %p90 = scmp.ne.s32.totalorder %s75, %s89
      %p91 = scmp.eq.s32.totalorder %s23, 0
      %p92 = por %p90, %p91
      %s94 = sadd.s32 %s93, 1
      %p97 = scmp.eq.s32.totalorder %s17, 1
      %p98 = scmp.ne.s32.totalorder %s93, %s95
      %p99 = scmp.eq.s32.totalorder %s17, 0
      %p100 = por %p98, %p99
      %p101 = scmp.ne.s32.totalorder %s93, %s95
      %p102 = scmp.eq.s32.totalorder %s22, 1
      %p103 = por %p101, %p102
      %p104 = scmp.ne.s32.totalorder %s95, %s96
      %p105 = scmp.eq.s32.totalorder %s22, 0
      %p106 = por %p104, %p105
      %p107 = scmp.ne.s32.totalorder %s95, %s96
      %p108 = scmp.eq.s32.totalorder %s23, 1
      %p109 = por %p107, %p108
      %p111 = scmp.ne.s32.totalorder %s96, %s110
      %p112 = scmp.eq.s32.totalorder %s23, 0
      %p113 = por %p111, %p112
      %s115 = sadd.s32 %s114, 1
      %p118 = scmp.eq.s32.totalorder %s17, 1
      %p119 = scmp.ne.s32.totalorder %s114, %s116
      %p120 = scmp.eq.s32.totalorder %s17, 0
      %p121 = por %p119, %p120
      %p122 = scmp.ne.s32.totalorder %s114, %s116
      %p123 = scmp.eq.s32.totalorder %s22, 1
      %p124 = por %p122, %p123
      %p125 = scmp.ne.s32.totalorder %s116, %s117
      %p126 = scmp.eq.s32.totalorder %s22, 0
      %p127 = por %p125, %p126
      %p128 = scmp.ne.s32.totalorder %s116, %s117
      %p129 = scmp.eq.s32.totalorder %s23, 1
      %p130 = por %p128, %p129
      %p132 = scmp.ne.s32.totalorder %s117, %s131
      %p133 = scmp.eq.s32.totalorder %s23, 0
      %p134 = por %p132, %p133
      %s136 = sadd.s32 %s135, 1
      %p139 = scmp.eq.s32.totalorder %s17, 1
      %p140 = scmp.ne.s32.totalorder %s135, %s137
      %p141 = scmp.eq.s32.totalorder %s17, 0
      %p142 = por %p140, %p141
      %p143 = scmp.ne.s32.totalorder %s135, %s137
      %p144 = scmp.eq.s32.totalorder %s22, 1
      %p145 = por %p143, %p144
      %p146 = scmp.ne.s32.totalorder %s137, %s138
      %p147 = scmp.eq.s32.totalorder %s22, 0
      %p148 = por %p146, %p147
      %p149 = scmp.ne.s32.totalorder %s137, %s138
      %p150 = scmp.eq.s32.totalorder %s23, 1
      %p151 = por %p149, %p150
      %p153 = scmp.ne.s32.totalorder %s138, %s152
      %p154 = scmp.eq.s32.totalorder %s23, 0
      %p155 = por %p153, %p154
      %s156 = ssub.s32 %s17, %s24
      %p157 = scmp.eq.s32.totalorder %s156, 0
      %s159 = sadd.s32 %s158, 1
      %s160 = scalar_select %p157, %s158, %s159
      %p163 = pneg %p157
      %p164 = scmp.eq.s32.totalorder %s17, 1
      %p165 = por %p163, %p164
      %p166 = scmp.ne.s32.totalorder %s158, %s161
      %p167 = scmp.eq.s32.totalorder %s17, 0
      %p168 = por %p166, %p167
      %p169 = scmp.ne.s32.totalorder %s158, %s161
      %p170 = scmp.eq.s32.totalorder %s22, 1
      %p171 = por %p169, %p170
      %p172 = scmp.ne.s32.totalorder %s161, %s162
      %p173 = scmp.eq.s32.totalorder %s22, 0
      %p174 = por %p172, %p173
      %p175 = scmp.ne.s32.totalorder %s161, %s162
      %p176 = scmp.eq.s32.totalorder %s23, 1
      %p177 = por %p175, %p176
      %p179 = scmp.ne.s32.totalorder %s162, %s178
      %p180 = scmp.eq.s32.totalorder %s23, 0
      %p181 = por %p179, %p180
      %s182 = ssub.s32 %s17, %s24
      %p183 = scmp.eq.s32.totalorder %s182, 0
      %s185 = sadd.s32 %s184, 1
      %s186 = scalar_select %p183, %s184, %s185
      %p189 = pneg %p183
      %p190 = scmp.eq.s32.totalorder %s17, 1
      %p191 = por %p189, %p190
      %p192 = scmp.ne.s32.totalorder %s184, %s187
      %p193 = scmp.eq.s32.totalorder %s17, 0
      %p194 = por %p192, %p193
      %p195 = scmp.ne.s32.totalorder %s184, %s187
      %p196 = scmp.eq.s32.totalorder %s22, 1
      %p197 = por %p195, %p196
      %p198 = scmp.ne.s32.totalorder %s187, %s188
      %p199 = scmp.eq.s32.totalorder %s22, 0
      %p200 = por %p198, %p199
      %p201 = scmp.ne.s32.totalorder %s187, %s188
      %p202 = scmp.eq.s32.totalorder %s23, 1
      %p203 = por %p201, %p202
      %p205 = scmp.ne.s32.totalorder %s188, %s204
      %p206 = scmp.eq.s32.totalorder %s23, 0
      %p207 = por %p205, %p206
      %p208 = scmp.le.s32.totalorder 1, %s17
      %p209 = scmp.lt.s32.totalorder %s17, 3
      %p210 = pnand %p208, %p209
      %p211 = pneg %p210
      // Predicated region
      $region9: #{tpu_custom_call.1} parent=5 // pred_check
        _
      $region10: #{tpu_custom_call.1} parent=5 // pred_check_branch
        %213 = sbr.rel (%p210) target = $region12
      $region11: #{tpu_custom_call.1} parent=5 // pred_region
        %s214 = ssub.s32 %s17, 1
        // Predicated region
        $region13: #{tpu_custom_call.1} parent=11 // pred_check
          %p215 = pneg %p64
        $region14: #{tpu_custom_call.1} parent=11 // pred_check_branch
          %217 = sbr.rel (%p215) target = $region16
        $region15: #{tpu_custom_call.1} parent=11 // pred_region
          _
        $region16: #{tpu_custom_call.1} parent=11 // pred_fallthru
          _
        // Predicated region
        $region17: #{tpu_custom_call.1} parent=11 // pred_check
          %p218 = pneg %p85
        $region18: #{tpu_custom_call.1} parent=11 // pred_check_branch
          %220 = sbr.rel (%p218) target = $region20
        $region19: #{tpu_custom_call.1} parent=11 // pred_region
          _
        $region20: #{tpu_custom_call.1} parent=11 // pred_fallthru
          _
        // Predicated region
        $region21: #{tpu_custom_call.1} parent=11 // pred_check
          %p221 = pneg %p106
        $region22: #{tpu_custom_call.1} parent=11 // pred_check_branch
          %223 = sbr.rel (%p221) target = $region24
        $region23: #{tpu_custom_call.1} parent=11 // pred_region
          _
        $region24: #{tpu_custom_call.1} parent=11 // pred_fallthru
          _
        // Predicated region
        $region25: #{tpu_custom_call.1} parent=11 // pred_check
          %p224 = pneg %p127
        $region26: #{tpu_custom_call.1} parent=11 // pred_check_branch
          %226 = sbr.rel (%p224) target = $region28
        $region27: #{tpu_custom_call.1} parent=11 // pred_region
          _
        $region28: #{tpu_custom_call.1} parent=11 // pred_fallthru
          _
        // Predicated region
        $region29: #{tpu_custom_call.1} parent=11 // pred_check
          %p227 = pneg %p148
        $region30: #{tpu_custom_call.1} parent=11 // pred_check_branch
          %229 = sbr.rel (%p227) target = $region32
        $region31: #{tpu_custom_call.1} parent=11 // pred_region
          _
        $region32: #{tpu_custom_call.1} parent=11 // pred_fallthru
          _
      $region12: #{tpu_custom_call.1} parent=5 // pred_fallthru
        _
      %p230 = scmp.lt.s32.totalorder %s17, 2
      // Predicated region
      $region33: #{tpu_custom_call.1} parent=5 // pred_check
        %p231 = pneg %p230
      $region34: #{tpu_custom_call.1} parent=5 // pred_check_branch
        %233 = sbr.rel (%p231) target = $region36
      $region35: #{tpu_custom_call.1} parent=5 // pred_region
        // Predicated region
        $region37: #{tpu_custom_call.1} parent=35 // pred_check
          %p234 = pneg %p37
        $region38: #{tpu_custom_call.1} parent=35 // pred_check_branch
          %236 = sbr.rel (%p234) target = $region40
        $region39: #{tpu_custom_call.1} parent=35 // pred_region
          %p237 = scmp.lt.s32.totalorder %s17, 1
          %s238 = scalar_select %p237, %s17, 1
          %s239 = smul.addr %s238, 8
          %s240 = scalar_lea.vmem %s0, %s239
        $region40: #{tpu_custom_call.1} parent=35 // pred_fallthru
          _
      $region36: #{tpu_custom_call.1} parent=5 // pred_fallthru
        _
      %p241 = scmp.le.s32.totalorder 1, %s17
      %p242 = scmp.lt.s32.totalorder %s17, 3
      %p243 = pnand %p241, %p242
      %p244 = pneg %p243
      // Predicated region
      $region41: #{tpu_custom_call.1} parent=5 // pred_check
        _
      $region42: #{tpu_custom_call.1} parent=5 // pred_check_branch
        %246 = sbr.rel (%p243) target = $region44
      $region43: #{tpu_custom_call.1} parent=5 // pred_region
        %s247 = ssub.s32 %s17, 1
        %p248 = scmp.lt.s32.totalorder %s22, 1
        %s249 = scalar_select %p248, %s22, 1
        %s250 = smul.addr %s249, 8
        %s251 = scalar_lea.vmem %s0, %s250
        %p252 = pneg %p43
        %p253 = pneg %p40
        %p254 = pneg %p64
        %p255 = pneg %p61
        %p256 = pneg %p85
        %p257 = pneg %p82
        %p258 = pneg %p106
        %p259 = pneg %p103
        %p260 = pneg %p127
        %p261 = pneg %p124
        %p262 = pneg %p148
        %p263 = pneg %p145
        %p264 = pneg %p174
        %p265 = pneg %p171
        %p266 = scmp.lt.s32.totalorder %s22, 1
        %s267 = scalar_select %p266, %s22, 1
        %s268 = smul.addr %s267, 8
        %s269 = scalar_lea.vmem %s6, %s268
        %p270 = pneg %p200
        %p271 = pneg %p197
        %s272 = sand.u32 %s187, 1
        %s273 = scalar_lea.sflag [#allocation3], %s272
        %s274 = sand.u32 %s187, 1
        %s275 = smul.addr %s274, 8
        %s276 = scalar_lea.vmem [#allocation2], %s275
        %p277 = scmp.lt.s32.totalorder %s22, 1
        %s278 = scalar_select %p277, %s22, 1
        %s279 = smul.addr %s278, 8
        %s280 = scalar_lea.vmem %s0, %s279
        %p281 = scmp.lt.s32.totalorder %s22, 1
        %s282 = scalar_select %p281, %s22, 1
        %s283 = smul.addr %s282, 8
        %s284 = scalar_lea.vmem %s6, %s283
        %v285 = vld [vmem:[%s280] sm:$0xff]
        %v286 = vld [vmem:[%s1] sm:$0xff]
        %v287 = vld [vmem:[%s1 + $0x8] sm:$0xff]
        %v288 = vld [vmem:[%s1 + $0x10] sm:$0xff]
        %v289 = vld [vmem:[%s1 + $0x18] sm:$0xff]
        %v290 = vld [vmem:[%s1 + $0x20] sm:$0xff]
        %v291 = vld [vmem:[%s1 + $0x28] sm:$0xff]
        %v292 = vld [vmem:[%s1 + $0x30] sm:$0xff]
        %v293 = vld [vmem:[%s1 + $0x38] sm:$0xff]
        %v294 = vld [vmem:[%s2] sm:$0x1]
        %v296 = vperm.slane %v294, 0
        %vm298 = vcmask 523264
        %v300 = vsel %vm298, %v285, 0
        %302 = vmatpush.msra.mxu0 0.0
        %303 = vmatpush.msra.mxu0 0.0
        %304 = vmatpush.msra.mxu0 0.0
        %305 = vmatpush.msra.mxu0 0.0
        %306 = vmatpush.msra.mxu0 0.0
        %307 = vmatpush.msra.mxu0 0.0
        %308 = vmatpush.msra.mxu0 0.0
        %309 = vmatpush.msra.mxu0 0.0
        %310 = vmatpush.msra.mxu0 %v293
        %311 = vmatpush.msra.mxu0 %v292
        %312 = vmatpush.msra.mxu0 %v291
        %313 = vmatpush.msra.mxu0 %v290
        %314 = vmatpush.msra.mxu0 %v289
        %315 = vmatpush.msra.mxu0 %v288
        %316 = vmatpush.msra.mxu0 %v287
        %317 = vmatpush.msra.mxu0 %v286
        %318 = vmatmul.f32.gmra.mxu0 %v300
        %v319 = vpop.f32.mrf.mxu0
        %v320 = vadd.f32 %v296, %v319
        %321 = vdwg.mxu0
        %v322 = vmax.f32 %v320, 0.0
        %v323 = vld [vmem:[%s3] sm:$0xff]
        %v324 = vld [vmem:[%s3 + $0x8] sm:$0xff]
        %v325 = vld [vmem:[%s3 + $0x10] sm:$0xff]
        %v326 = vld [vmem:[%s3 + $0x18] sm:$0xff]
        %v327 = vld [vmem:[%s3 + $0x20] sm:$0xff]
        %v328 = vld [vmem:[%s3 + $0x28] sm:$0xff]
        %v329 = vld [vmem:[%s3 + $0x30] sm:$0xff]
        %v330 = vld [vmem:[%s3 + $0x38] sm:$0xff]
        %v331 = vld [vmem:[%s3 + $0x40] sm:$0xff]
        %v332 = vld [vmem:[%s3 + $0x48] sm:$0xff]
        %v333 = vld [vmem:[%s3 + $0x50] sm:$0xff]
        %v334 = vld [vmem:[%s3 + $0x58] sm:$0xff]
        %v335 = vld [vmem:[%s3 + $0x60] sm:$0xff]
        %v336 = vld [vmem:[%s3 + $0x68] sm:$0xff]
        %v337 = vld [vmem:[%s3 + $0x70] sm:$0xff]
        %v338 = vld [vmem:[%s3 + $0x78] sm:$0xff]
        %v339 = vld [vmem:[%s4] sm:$0x1]
        %v341 = vperm.slane %v339, 0
        %343 = vmatpush.msra.mxu0 %v338
        %344 = vmatpush.msra.mxu0 %v337
        %345 = vmatpush.msra.mxu0 %v336
        %346 = vmatpush.msra.mxu0 %v335
        %347 = vmatpush.msra.mxu0 %v334
        %348 = vmatpush.msra.mxu0 %v333
        %349 = vmatpush.msra.mxu0 %v332
        %350 = vmatpush.msra.mxu0 %v331
        %351 = vmatpush.msra.mxu0 %v330
        %352 = vmatpush.msra.mxu0 %v329
        %353 = vmatpush.msra.mxu0 %v328
        %354 = vmatpush.msra.mxu0 %v327
        %355 = vmatpush.msra.mxu0 %v326
        %356 = vmatpush.msra.mxu0 %v325
        %357 = vmatpush.msra.mxu0 %v324
        %358 = vmatpush.msra.mxu0 %v323
        %359 = vmatmul.f32.gmra.mxu0 %v322
        %v360 = vpop.f32.mrf.mxu0
        %v361 = vadd.f32 %v341, %v360
        %362 = vdwg.mxu0
        %vm363 = vcmask 64512
        %v364 = vsel %vm363, %v361, -inf
        %365 = vmax.xlane.f32.xlu0 %v364
        %v366 = vpop.xlane.xlu0 %365
        %v367 = vsub.f32 %v361, %v366
        %v368 = vmul.f32 %v367, 1.442695
        %v369 = vpow.pop %v368
        %v370 = vsel %vm363, %v369, 0.0
        %371 = vadd.xlane.f32.xlu0 %v370
        %v372 = vpop.xlane.xlu0 %371
        %v373 = vrcp.pop %v372
        %v374 = vmul.f32 %v372, %v373
        %v375 = vsub.f32 1.0, %v374
        %v376 = vmul.f32 %v373, %v375
        %v377 = vadd.f32 %v373, %v376
        %vm378 = vweird.f32 %v372
        %vm379 = vweird.f32 %v373
        %vm380 = vmor %vm378, %vm379
        %v381 = vsel %vm380, %v373, %v377
        %v382 = vand.u32 2147483647, %v372
        %vm383 = vcmp.eq.f32.partialorder %v382, 8.507059e+37
        %v384 = vand.u32 %v372, 2147483648
        %v385 = vor.u32 1.1754944e-38, %v384
        %v386 = vsel %vm383, %v385, %v381
        %v387 = vmul.f32 %v369, %v386
        %388 = vst.msk [vmem:[%s284] sm:$0xff] %vm363, %v387
        %v389 = vld [vmem:[%s5] sm:$0xff]
        %v391 = vsel %vm363, %v387, 0
        %393 = vmatpush.msra.mxu0 0.0
        %394 = vmatpush.msra.mxu0 0.0
        %395 = vmatpush.msra.mxu0 0.0
        %396 = vmatpush.msra.mxu0 0.0
        %397 = vmatpush.msra.mxu0 0.0
        %398 = vmatpush.msra.mxu0 0.0
        %399 = vmatpush.msra.mxu0 0.0
        %400 = vmatpush.msra.mxu0 0.0
        %401 = vmatpush.msra.mxu0 0.0
        %402 = vmatpush.msra.mxu0 0.0
        %403 = vmatpush.msra.mxu0 0.0
        %404 = vmatpush.msra.mxu0 0.0
        %405 = vmatpush.msra.mxu0 0.0
        %406 = vmatpush.msra.mxu0 0.0
        %407 = vmatpush.msra.mxu0 0.0
        %408 = vmatpush.msra.mxu0 %v389
        %409 = vmatmul.f32.gmra.mxu0 %v391
        %v410 = vpop.f32.mrf.mxu0
        %v411 = vadd.f32 0.0, %v410
        %412 = vdwg.mxu0
        %vm413 = vcmask 261120
        %414 = vst.msk [vmem:[%s276] sm:$0xff] %vm413, %v411
        %p415 = scmp.lt.s32.totalorder %s22, 1
        %s416 = scalar_select %p415, %s22, 1
        %s417 = smul.addr %s416, 8
        %s418 = scalar_lea.vmem %s6, %s417
        %s419 = sand.u32 %s187, 1
        %s420 = scalar_lea.sflag [#allocation3], %s419
        %s421 = sand.u32 %s187, 1
        %s422 = smul.addr %s421, 8
        %s423 = scalar_lea.vmem [#allocation2], %s422
        // Predicated region
        $region45: #{tpu_custom_call.1} parent=43 // pred_check
          %p424 = pneg %p171
        $region46: #{tpu_custom_call.1} parent=43 // pred_check_branch
          %426 = sbr.rel (%p424) target = $region48
        $region47: #{tpu_custom_call.1} parent=43 // pred_region
          _
        $region48: #{tpu_custom_call.1} parent=43 // pred_fallthru
          _
        // Predicated region
        $region49: #{tpu_custom_call.1} parent=43 // pred_check
          %p427 = pneg %p197
        $region50: #{tpu_custom_call.1} parent=43 // pred_check_branch
          %429 = sbr.rel (%p427) target = $region52
        $region51: #{tpu_custom_call.1} parent=43 // pred_region
          %431 = vsyncadd %s420, 0
          %s432 = smul.addr %s22, 8
          %s433 = scalar_lea.hbm %s7, %s432
          %s435 = sshll.u32 %s423, 4
          %s436 = int_to_ptr.vmem [resolvable:$true] %s435
          %s437 = sshll.u32 %s433, 4
          %s438 = int_to_ptr.hbm [resolvable:$true] %s437
          %440 = dma.vmem_to_hbm [thread:$0]  %s436, 128, %s438, %s420
        $region52: #{tpu_custom_call.1} parent=43 // pred_fallthru
          _
      $region44: #{tpu_custom_call.1} parent=5 // pred_fallthru
        _
      %p441 = scmp.le.s32.totalorder 2, %s17
      // Predicated region
      $region53: #{tpu_custom_call.1} parent=5 // pred_check
        %p442 = pneg %p441
      $region54: #{tpu_custom_call.1} parent=5 // pred_check_branch
        %444 = sbr.rel (%p442) target = $region56
      $region55: #{tpu_custom_call.1} parent=5 // pred_region
        %s445 = ssub.s32 %s17, 2
        // Predicated region
        $region57: #{tpu_custom_call.1} parent=55 // pred_check
          %p446 = pneg %p177
        $region58: #{tpu_custom_call.1} parent=55 // pred_check_branch
          %448 = sbr.rel (%p446) target = $region60
        $region59: #{tpu_custom_call.1} parent=55 // pred_region
          %p449 = scmp.lt.s32.totalorder %s23, 1
          %s450 = scalar_select %p449, %s23, 1
          %s451 = smul.addr %s450, 8
          %s452 = scalar_lea.vmem %s6, %s451
        $region60: #{tpu_custom_call.1} parent=55 // pred_fallthru
          _
        // Predicated region
        $region61: #{tpu_custom_call.1} parent=55 // pred_check
          %p453 = pneg %p203
        $region62: #{tpu_custom_call.1} parent=55 // pred_check_branch
          %455 = sbr.rel (%p453) target = $region64
        $region63: #{tpu_custom_call.1} parent=55 // pred_region
          %s456 = sand.u32 %s188, 1
          %s457 = scalar_lea.sflag [#allocation3], %s456
          %s458 = sand.u32 %s188, 1
          %s459 = smul.addr %s458, 8
          %s460 = scalar_lea.vmem [#allocation2], %s459
          %462 = dma.done %s457, 128
        $region64: #{tpu_custom_call.1} parent=55 // pred_fallthru
          _
      $region56: #{tpu_custom_call.1} parent=5 // pred_fallthru
        _
    $region6: #{tpu_custom_call.1} parent=1 // loop_footer
      %s21 = sadd.s32 1, %s17
    $region7: #{tpu_custom_call.1} parent=1 // loop_footer_branch
      %16 = sbr.rel target = $region3
    $region8: #{tpu_custom_call.1} parent=1 // loop_exit
      _
    %463 = vsyncpa [#allocation3], 1
    %s464 = scalar_lea.sflag [#allocation3], 1
    %465 = vsyncpa %s464, 1

</llo_original>
